<compile_context>
chip_gen: v7x
topology: tpu7x:2x2x1
jax: 0.10.0
libtpu: 0.0.40
codegen_flags: <defaults>
</compile_context>

<pallas_src>
import functools

import jax
import jax.numpy as jnp
from jax import lax
from jax.experimental import pallas as pl
from jax.experimental.pallas import tpu as pltpu


# ----------------------------------------------------------------------------
# Kernels
# ----------------------------------------------------------------------------
def _linear_kernel_single_k(x_ref, w_ref, b_ref, o_ref):
    """Single K step: out = x @ w.T + b directly, no accumulator scratch.

    x_ref: (tm, tk)  activation tile
    w_ref: (tn, tk)  weight tile in PyTorch [out, in] layout
    b_ref: (1, tn)   bias tile
    o_ref: (tm, tn)  output tile
    """
    # TODO(synk): if pl.lower_as_mlir shows a per-step vxpose for this NT
    # contraction, pre-transpose the weight once (one-time layout pass) --
    # vxpose shares the vector-extended VLIW slots with the MXU push stream.
    acc = lax.dot_general(
        x_ref[...], w_ref[...],
        dimension_numbers=(((1,), (1,)), ((), ())),
        preferred_element_type=jnp.float32)
    o_ref[...] = (acc + b_ref[...].astype(jnp.float32)).astype(o_ref.dtype)


def _linear_kernel_multi_k(x_ref, w_ref, b_ref, o_ref, acc_ref):
    """K-innermost accumulation; bias folded into the k == 0 init."""
    k = pl.program_id(2)

    @pl.when(k == 0)
    def _():
        acc_ref[...] = jnp.broadcast_to(
            b_ref[...].astype(jnp.float32), acc_ref.shape)

    acc_ref[...] += lax.dot_general(
        x_ref[...], w_ref[...],
        dimension_numbers=(((1,), (1,)), ((), ())),
        preferred_element_type=jnp.float32)

    @pl.when(k == pl.num_programs(2) - 1)
    def _():
        o_ref[...] = acc_ref[...].astype(o_ref.dtype)


# ----------------------------------------------------------------------------
# Tiling helpers
# ----------------------------------------------------------------------------
def _round_up(x: int, m: int) -> int:
    return ((x + m - 1) // m) * m


def _largest_divisor_tile(extent: int, unit: int, cap: int) -> int:
    """Largest multiple of `unit` that divides `extent` (a unit-multiple) and
    is <= cap.  Falls back to `unit` if nothing fits."""
    nblocks = extent // unit
    best = 1
    for d in range(1, nblocks + 1):
        if nblocks % d == 0 and d * unit <= cap:
            best = d
    return best * unit


@functools.lru_cache(maxsize=1)
def _tile_caps():
    """(tm_cap, tn_cap, tk_cap, vmem_limit_bytes_or_None), generation-gated."""
    try:
        vmem = int(pltpu.get_tpu_info().vmem_capacity_bytes)
    except Exception:
        vmem = 0
    if vmem >= (100 << 20):
        # v5e / v6e: 128 MiB physical VMEM -- larger N/K tiles cut weight
        # re-streaming and per-step overhead; raise the scoped VMEM limit.
        return 512, 1024, 2048, 96 << 20
    # v7x (64 MiB VMEM) or unknown: conservative ~11 MiB double-buffered set,
    # fits the 32 MiB default scoped limit without an override.
    return 512, 512, 1024, None


def _pad2(a, rpad: int, cpad: int):
    if rpad == 0 and cpad == 0:
        return a                      # no HBM pad-copy when already aligned
    return jnp.pad(a, ((0, rpad), (0, cpad)))


# ----------------------------------------------------------------------------
# Wrapper: torch.nn.Linear(dims_in, dims_out)(x) semantics
# ----------------------------------------------------------------------------
def linear_regression_zeroed(x: jax.Array, weight: jax.Array,
                             bias: jax.Array) -> jax.Array:
    """Computes x @ weight.T + bias.

    x:      [batch, dims_in]     float32
    weight: [dims_out, dims_in]  float32 (PyTorch convention, NOT transposed)
    bias:   [dims_out]           float32
    """
    batch, dims_in = x.shape
    dims_out, dims_in_w = weight.shape
    assert dims_in_w == dims_in and bias.shape == (dims_out,)

    tm_cap, tn_cap, tk_cap, vmem_limit = _tile_caps()

    # Granularity-only padding (sublane / lane alignment) -- never tile-size.
    m_pad = _round_up(batch, 8)
    n_pad = _round_up(dims_out, 128)        # lane-dense output & bias tiles
    k_pad = _round_up(dims_in, 128)

    # Tiles are divisors of the padded extents -> no partial blocks and no
    # K padding beyond the 128-alignment above.
    tm = _largest_divisor_tile(m_pad, 8, tm_cap)
    tn = _largest_divisor_tile(n_pad, 128, tn_cap)
    tk = _largest_divisor_tile(k_pad, 128, tk_cap)

    m_grid, n_grid, k_grid = m_pad // tm, n_pad // tn, k_pad // tk

    # v7x has 2 TensorCores: guarantee >= 2 parallel (i, j) blocks when the
    # problem allows it (costs nothing on single-TC v5e/v6e).
    if m_grid == 1 and n_grid == 1:
        if n_pad >= 2 * 128:
            tn = _largest_divisor_tile(n_pad, 128, n_pad // 2)
        elif m_pad >= 2 * 8:
            tm = _largest_divisor_tile(m_pad, 8, m_pad // 2)
        m_grid, n_grid = m_pad // tm, n_pad // tn

    # Pad only the arrays/dims that actually need it.
    xp = _pad2(x, m_pad - batch, k_pad - dims_in)
    wp = _pad2(weight, n_pad - dims_out, k_pad - dims_in)
    bp = bias if n_pad == dims_out else jnp.pad(bias, (0, n_pad - dims_out))
    bp = bp.reshape(1, n_pad)

    flops = 2 * m_pad * k_pad * n_pad
    bytes_accessed = 4 * (m_pad * k_pad * n_grid      # x re-read per N tile
                          + n_pad * k_pad * m_grid    # w re-read per M tile
                          + n_pad + m_pad * n_pad)

    if k_grid == 1:
        # Fast path: single K step, no accumulator round-trip.
        grid = (m_grid, n_grid)
        kernel = _linear_kernel_single_k
        in_specs = [
            pl.BlockSpec((tm, tk), lambda i, j: (i, 0)),   # x tile
            pl.BlockSpec((tn, tk), lambda i, j: (j, 0)),   # weight tile
            pl.BlockSpec((1, tn), lambda i, j: (0, j)),    # bias tile
        ]
        out_spec = pl.BlockSpec((tm, tn), lambda i, j: (i, j))
        scratch_shapes = []
        dim_sem = ("parallel", "parallel")
    else:
        grid = (m_grid, n_grid, k_grid)                    # K stays innermost
        kernel = _linear_kernel_multi_k
        in_specs = [
            pl.BlockSpec((tm, tk), lambda i, j, k: (i, k)),
            pl.BlockSpec((tn, tk), lambda i, j, k: (j, k)),
            pl.BlockSpec((1, tn), lambda i, j, k: (0, j)),
        ]
        out_spec = pl.BlockSpec((tm, tn), lambda i, j, k: (i, j))
        scratch_shapes = [pltpu.VMEM((tm, tn), jnp.float32)]
        dim_sem = ("parallel", "parallel", "arbitrary")

    cp_kwargs = dict(dimension_semantics=dim_sem)
    if vmem_limit is not None:
        cp_kwargs["vmem_limit_bytes"] = vmem_limit

    out = pl.pallas_call(
        kernel,
        out_shape=jax.ShapeDtypeStruct((m_pad, n_pad), x.dtype),
        grid_spec=pltpu.PrefetchScalarGridSpec(
            num_scalar_prefetch=0,
            grid=grid,
            in_specs=in_specs,
            out_specs=out_spec,
            scratch_shapes=scratch_shapes,
        ),
        compiler_params=pltpu.CompilerParams(**cp_kwargs),
        cost_estimate=pl.CostEstimate(
            flops=flops, transcendentals=0, bytes_accessed=bytes_accessed),
    )(xp, wp, bp)

    if m_pad != batch or n_pad != dims_out:
        out = out[:batch, :dims_out]
    return out


if __name__ == "__main__":
    linear_fn = jax.jit(linear_regression_zeroed)

    # --- 1) Exact module test shape: LinearRegressionZeroed(2, 1) on
    #        get_lin_reg_data(3) -> batch=6, dims_in=2, dims_out=1, zero params.
    dims_in, dims_out = 2, 1
    num_each_class = 3
    key = jax.random.PRNGKey(0)
    x_base = jnp.array([[1.0, 0.0]] * num_each_class
                       + [[0.0, 1.0]] * num_each_class, dtype=jnp.float32)
    x = x_base + 0.01 * jax.random.normal(key, x_base.shape, dtype=jnp.float32)

    weight = jnp.zeros((dims_out, dims_in), dtype=jnp.float32)  # zeroed params
    bias = jnp.zeros((dims_out,), dtype=jnp.float32)

    out = jax.block_until_ready(linear_fn(x, weight, bias))
    ref = x @ weight.T + bias
    assert out.shape == (2 * num_each_class, dims_out)
    assert jnp.allclose(out, ref, atol=1e-6)
    assert jnp.allclose(out, jnp.zeros_like(out), atol=1e-6)

    # --- 2) Ragged single-K-step path: K=640 streams unpadded (one K step),
    #        N padded 130 -> 256 and split into two lane-dense tiles.
    k1, k2, k3 = jax.random.split(jax.random.PRNGKey(0), 3)
    b2, in2, out2 = 40, 640, 130
    x2 = jax.random.normal(k1, (b2, in2), dtype=jnp.float32)
    w2 = jax.random.normal(k2, (out2, in2), dtype=jnp.float32) * 0.05
    bias2 = jax.random.normal(k3, (out2,), dtype=jnp.float32)

    got2 = jax.block_until_ready(linear_fn(x2, w2, bias2))
    ref2 = x2 @ w2.T + bias2
    assert got2.shape == (b2, out2)
    assert jnp.allclose(got2, ref2, atol=2e-4, rtol=2e-4)

    # --- 3) Multi-K-step accumulator path (dims_in exceeds tk cap on all gens).
    k4, k5, k6 = jax.random.split(jax.random.PRNGKey(1), 3)
    b3, in3, out3 = 16, 2304, 192
    x3 = jax.random.normal(k4, (b3, in3), dtype=jnp.float32)
    w3 = jax.random.normal(k5, (out3, in3), dtype=jnp.float32) * 0.05
    bias3 = jax.random.normal(k6, (out3,), dtype=jnp.float32)

    got3 = jax.block_until_ready(linear_fn(x3, w3, bias3))
    ref3 = x3 @ w3.T + bias3
    assert got3.shape == (b3, out3)
    assert jnp.allclose(got3, ref3, atol=1e-3, rtol=1e-3)

    print("KERNEL_OK")
</pallas_src>

<mosaic_0001>
module attributes {stable_mosaic.version = 11 : i64} {
  func.func @_linear_kernel_single_k(%arg0: i32, %arg1: i32, %arg2: memref<8x128xf32, #tpu.memory_space<vmem>>, %arg3: memref<128x128xf32, #tpu.memory_space<vmem>>, %arg4: memref<1x128xf32, #tpu.memory_space<vmem>>, %arg5: memref<8x128xf32, #tpu.memory_space<vmem>>) attributes {dimension_semantics = [#tpu.dimension_semantics<parallel>, #tpu.dimension_semantics<parallel>], iteration_bounds = array<i64: 1, 1>, scalar_prefetch = 0 : i64, scratch_operands = 0 : i64, tpu.core_type = #tpu.core_type<tc>, window_params = [{transform_indices = @transform_0, window_bounds = array<i64: 8, 128>}, {transform_indices = @transform_1, window_bounds = array<i64: 128, 128>}, {transform_indices = @transform_2, window_bounds = array<i64: 1, 128>}, {transform_indices = @transform_3, window_bounds = array<i64: 8, 128>}]} {
    %c0 = arith.constant 0 : index
    %c0_0 = arith.constant 0 : index
    %0 = vector.load %arg2[%c0, %c0_0] : memref<8x128xf32, #tpu.memory_space<vmem>>, vector<8x128xf32>
    %c0_1 = arith.constant 0 : index
    %c0_2 = arith.constant 0 : index
    %1 = vector.load %arg3[%c0_1, %c0_2] : memref<128x128xf32, #tpu.memory_space<vmem>>, vector<128x128xf32>
    %cst = arith.constant dense<0.000000e+00> : vector<8x128xf32>
    %2 = tpu.matmul %0, %1, %cst {dimension_numbers = #tpu.dot_dimension_numbers<[1], [1], [0], [0], [0, 0, 1, 0], [], []>} : vector<8x128xf32>, vector<128x128xf32>, vector<8x128xf32> -> vector<8x128xf32>
    %c0_3 = arith.constant 0 : index
    %c0_4 = arith.constant 0 : index
    %3 = vector.load %arg4[%c0_3, %c0_4] : memref<1x128xf32, #tpu.memory_space<vmem>>, vector<1x128xf32>
    %4 = vector.broadcast %3 : vector<1x128xf32> to vector<8x128xf32>
    %5 = arith.addf %2, %4 : vector<8x128xf32>
    %c0_5 = arith.constant 0 : index
    %c0_6 = arith.constant 0 : index
    %6 = vector.load %arg5[%c0_5, %c0_6] : memref<8x128xf32, #tpu.memory_space<vmem>>, vector<8x128xf32>
    tpu.vector_store %arg5[%c0_5, %c0_6], %5 {strides = array<i32>} : memref<8x128xf32, #tpu.memory_space<vmem>>, vector<8x128xf32>,
    return
  }
  func.func @transform_0(%arg0: i32, %arg1: i32) -> (i32, i32) {
    %c0_i32 = arith.constant 0 : i32
    %c0_i32_0 = arith.constant 0 : i32
    return %arg0, %c0_i32 : i32, i32
  }
  func.func @transform_1(%arg0: i32, %arg1: i32) -> (i32, i32) {
    %c0_i32 = arith.constant 0 : i32
    %c0_i32_0 = arith.constant 0 : i32
    return %arg1, %c0_i32 : i32, i32
  }
  func.func @transform_2(%arg0: i32, %arg1: i32) -> (i32, i32) {
    %c0_i32 = arith.constant 0 : i32
    %c0_i32_0 = arith.constant 0 : i32
    return %c0_i32, %arg1 : i32, i32
  }
  func.func @transform_3(%arg0: i32, %arg1: i32) -> (i32, i32) {
    %c0_i32 = arith.constant 0 : i32
    return %arg0, %arg1 : i32, i32
  }
}

</mosaic_0001>

<llo_original>
// kernel: linear_regression_zeroed.1
$region0: #{linear_regression_zeroed.1}
  #allocation0 [shape = 'u32[]', space=smem, size = 0x4, offset = 0x4, fixed_abs, tag = 'smem constant byte address 0x4 - core index']
  #allocation1 [shape = 'u32[144,128]{1,0:T(1,128)}', space=vmem, size = 0x12000, scoped, tag = 'internal scratch']
  %s0 = inlined_call_operand.vmem [shape: f32[8,128], index: 0, kind: input, shape index: {}]
  %s1 = inlined_call_operand.vmem [shape: f32[128,128], index: 1, kind: input, shape index: {}]
  %s2 = inlined_call_operand.vmem [shape: f32[1,128], index: 2, kind: input, shape index: {}]
  %s3 = inlined_call_operand.vmem [shape: f32[8,128], index: 3, kind: output, shape index: {}]
  %s4 = sld [smem:[#allocation0]]
  $region22: #{linear_regression_zeroed.1} parent=0
    _
  %s6 = ssub.s32 1, %s4
  %s7 = scalar_select 0, %s6, %s4
  // Predicated region
  $region2: #{linear_regression_zeroed.1} parent=0 // pred_check
    _
  $region3: #{linear_regression_zeroed.1} parent=0 // pred_check_branch
    %9 = sbr.rel (0) target = $region5
  $region4: #{linear_regression_zeroed.1} parent=0 // pred_region
    _
  $region5: #{linear_regression_zeroed.1} parent=0 // pred_fallthru
    _
  // Predicated region
  $region6: #{linear_regression_zeroed.1} parent=0 // pred_check
    _
  $region7: #{linear_regression_zeroed.1} parent=0 // pred_check_branch
    %11 = sbr.rel (0) target = $region9
  $region8: #{linear_regression_zeroed.1} parent=0 // pred_region
    _
  $region9: #{linear_regression_zeroed.1} parent=0 // pred_fallthru
    _
  // Predicated region
  $region10: #{linear_regression_zeroed.1} parent=0 // pred_check
    _
  $region11: #{linear_regression_zeroed.1} parent=0 // pred_check_branch
    %13 = sbr.rel (0) target = $region13
  $region12: #{linear_regression_zeroed.1} parent=0 // pred_region
    _
  $region13: #{linear_regression_zeroed.1} parent=0 // pred_fallthru
    _
  %v14 = vld [vmem:[%s0] sm:$0xff]
  %v15 = vld [vmem:[%s1] sm:$0xff]
  %v16 = vld [vmem:[%s1 + $0x8] sm:$0xff]
  %v17 = vld [vmem:[%s1 + $0x10] sm:$0xff]
  %v18 = vld [vmem:[%s1 + $0x18] sm:$0xff]
  %v19 = vld [vmem:[%s1 + $0x20] sm:$0xff]
  %v20 = vld [vmem:[%s1 + $0x28] sm:$0xff]
  %v21 = vld [vmem:[%s1 + $0x30] sm:$0xff]
  %v22 = vld [vmem:[%s1 + $0x38] sm:$0xff]
  %v23 = vld [vmem:[%s1 + $0x40] sm:$0xff]
  %v24 = vld [vmem:[%s1 + $0x48] sm:$0xff]
  %v25 = vld [vmem:[%s1 + $0x50] sm:$0xff]
  %v26 = vld [vmem:[%s1 + $0x58] sm:$0xff]
  %v27 = vld [vmem:[%s1 + $0x60] sm:$0xff]
  %v28 = vld [vmem:[%s1 + $0x68] sm:$0xff]
  %v29 = vld [vmem:[%s1 + $0x70] sm:$0xff]
  %v30 = vld [vmem:[%s1 + $0x78] sm:$0xff]
  %v31 = vld [vmem:[%s2] sm:$0x1]
  %v33 = vlaneseq
  %v34 = vshrl.u32 %v33, 7
  %v35 = vsub.s32 0, %v34
  %v36 = vrot.slane %v31, %v35
  %38 = vmatprep.subr.mxu0 0.0
  %39 = vmatpush1.xpose.msra.mxu0 %v15
  %40 = vmatprep.subr.mxu0 0.0
  %41 = vmatpush1.xpose.msra.mxu0 %v16
  %42 = vmatprep.subr.mxu0 0.0
  %43 = vmatpush1.xpose.msra.mxu0 %v17
  %44 = vmatprep.subr.mxu0 0.0
  %45 = vmatpush1.xpose.msra.mxu0 %v18
  %46 = vmatprep.subr.mxu0 0.0
  %47 = vmatpush1.xpose.msra.mxu0 %v19
  %48 = vmatprep.subr.mxu0 0.0
  %49 = vmatpush1.xpose.msra.mxu0 %v20
  %50 = vmatprep.subr.mxu0 0.0
  %51 = vmatpush1.xpose.msra.mxu0 %v21
  %52 = vmatprep.subr.mxu0 0.0
  %53 = vmatpush1.xpose.msra.mxu0 %v22
  %54 = vmatprep.subr.mxu0 0.0
  %55 = vmatpush1.xpose.msra.mxu0 %v23
  %56 = vmatprep.subr.mxu0 0.0
  %57 = vmatpush1.xpose.msra.mxu0 %v24
  %58 = vmatprep.subr.mxu0 0.0
  %59 = vmatpush1.xpose.msra.mxu0 %v25
  %60 = vmatprep.subr.mxu0 0.0
  %61 = vmatpush1.xpose.msra.mxu0 %v26
  %62 = vmatprep.subr.mxu0 0.0
  %63 = vmatpush1.xpose.msra.mxu0 %v27
  %64 = vmatprep.subr.mxu0 0.0
  %65 = vmatpush1.xpose.msra.mxu0 %v28
  %66 = vmatprep.subr.mxu0 0.0
  %67 = vmatpush1.xpose.msra.mxu0 %v29
  %68 = vmatprep.subr.mxu0 0.0
  %69 = vmatpush1.xpose.msra.mxu0 %v30
  %70 = vmatprep.subr.mxu0 0.0
  %71 = vmatpush1.xpose.msra.mxu0 0.0
  %72 = vmatprep.subr.mxu0 0.0
  %73 = vmatpush1.xpose.msra.mxu0 0.0
  %74 = vmatprep.subr.mxu0 0.0
  %75 = vmatpush1.xpose.msra.mxu0 0.0
  %76 = vmatprep.subr.mxu0 0.0
  %77 = vmatpush1.xpose.msra.mxu0 0.0
  %78 = vmatprep.subr.mxu0 0.0
  %79 = vmatpush1.xpose.msra.mxu0 0.0
  %80 = vmatprep.subr.mxu0 0.0
  %81 = vmatpush1.xpose.msra.mxu0 0.0
  %82 = vmatprep.subr.mxu0 0.0
  %83 = vmatpush1.xpose.msra.mxu0 0.0
  %84 = vmatprep.subr.mxu0 0.0
  %85 = vmatpush1.xpose.msra.mxu0 0.0
  %86 = vmatprep.subr.mxu0 0.0
  %87 = vmatpush1.xpose.msra.mxu0 0.0
  %88 = vmatprep.subr.mxu0 0.0
  %89 = vmatpush1.xpose.msra.mxu0 0.0
  %90 = vmatprep.subr.mxu0 0.0
  %91 = vmatpush1.xpose.msra.mxu0 0.0
  %92 = vmatprep.subr.mxu0 0.0
  %93 = vmatpush1.xpose.msra.mxu0 0.0
  %94 = vmatprep.subr.mxu0 0.0
  %95 = vmatpush1.xpose.msra.mxu0 0.0
  %96 = vmatprep.subr.mxu0 0.0
  %97 = vmatpush1.xpose.msra.mxu0 0.0
  %98 = vmatprep.subr.mxu0 0.0
  %99 = vmatpush1.xpose.msra.mxu0 0.0
  %100 = vmatprep.subr.mxu0 0.0
  %101 = vmatpush1.xpose.msra.mxu0 0.0
  %102 = vmatprep.mubr.f32.mxu0 0.0
  %103 = vmatmul.mubr.f32.gmra.mrb[0].mxu0 %v14
  %v104 = vpop.f32.mrb[0].mxu0
  %v105 = vadd.f32 %v36, %v104
  %v106 = vpop.f32.mrb[0].mxu0
  %107 = vdwg.mxu0
  %108 = vst [vmem:[%s3] sm:$0xff] %v105
  // Predicated region
  $region14: #{linear_regression_zeroed.1} parent=0 // pred_check
    _
  $region15: #{linear_regression_zeroed.1} parent=0 // pred_check_branch
    %110 = sbr.rel (0) target = $region17
  $region16: #{linear_regression_zeroed.1} parent=0 // pred_region
    _
  $region17: #{linear_regression_zeroed.1} parent=0 // pred_fallthru
    _
  // Predicated region
  $region18: #{linear_regression_zeroed.1} parent=0 // pred_check
    _
  $region19: #{linear_regression_zeroed.1} parent=0 // pred_check_branch
    %112 = sbr.rel (0) target = $region21
  $region20: #{linear_regression_zeroed.1} parent=0 // pred_region
    _
  $region21: #{linear_regression_zeroed.1} parent=0 // pred_fallthru
    _

</llo_original>
